<compile_context>
chip_gen: v5e
topology: v5e:2x2
jax: 0.10.0
libtpu: 0.0.40
codegen_flags: <defaults>
</compile_context>

<pallas_src>
import functools

import jax
import jax.numpy as jnp
from jax.experimental import pallas as pl
from jax.experimental.pallas import tpu as pltpu


# --------------------------------------------------------------------------
# Hardware queries (fall back to conservative defaults if attributes differ).
# --------------------------------------------------------------------------
def _tpu_vmem_bytes(default=64 * 1024 * 1024):
    try:
        info = pltpu.get_tpu_info()
        for attr in ("vmem_capacity_bytes", "vmem_bytes", "vmem_size_bytes"):
            v = getattr(info, attr, None)
            if isinstance(v, int) and v > 0:
                return v
    except Exception:
        pass
    return default  # v7x-sized: safe everywhere


def _num_tensorcores(default=1):
    # >1 only matters for megacore parts (v7x); 1 is correct & optimal on v5e/v6e.
    try:
        info = pltpu.get_tpu_info()
        for attr in ("num_cores", "core_count", "cores_per_chip",
                     "num_tensorcores", "tensorcores_per_chip"):
            v = getattr(info, attr, None)
            if isinstance(v, int) and v >= 1:
                return v
    except Exception:
        pass
    try:
        v = getattr(jax.devices()[0], "num_cores", None)
        if isinstance(v, int) and v >= 1:
            return v
    except Exception:
        pass
    return default


# --------------------------------------------------------------------------
# Focal loss kernel (all labels treated as negative; positives fixed outside).
# Block layout: logits block (bs, K, tile_hw) -> HW on lanes, K on sublanes,
# bs folded into the block.  Output block (K, tile_hw) per parallel slice is
# the resident VMEM accumulator across the spatial reduction axis.
# --------------------------------------------------------------------------
def _focal_neg_kernel(logits_ref, out_ref, *, gamma, hw, tile_hw, nb_inner):
    c = pl.program_id(0)   # parallel slice (megacore on v7x)
    j = pl.program_id(1)   # spatial block  (reduction)

    @pl.when(j == 0)
    def _():
        out_ref[...] = jnp.zeros_like(out_ref)

    x = logits_ref[...].astype(jnp.float32)                  # (bs, K, T)
    t = x.shape[-1]

    # Lane validity: global spatial index < hw.  Handles the ragged last tile
    # and the clamped duplicate block of an odd parallel split.  Only the
    # final select masks (stale / duplicate data is safe under a select).
    blk = c * nb_inner + j
    lane = jax.lax.broadcasted_iota(jnp.int32, (1, 1, t), 2)
    valid = (blk * tile_hw + lane) < hw                       # (1, 1, T)

    # y == 0 everywhere:
    #   ce   = softplus(x) = max(x,0) + log1p(exp(-|x|))
    #   1-pt = sigmoid(x)
    #   loss = sigmoid(x)^gamma * ce        (the (1-alpha) scale applied outside)
    e = jnp.exp(-jnp.abs(x))                                  # EUP exp
    ce = jnp.maximum(x, 0.0) + jnp.log1p(e)                   # EUP log1p
    inv = pl.reciprocal(1.0 + e, approx=True)                 # EUP approx recip
    p = jnp.where(x >= 0.0, inv, e * inv)                     # sigmoid(x)
    if float(gamma) == int(gamma) and int(gamma) >= 0:
        mod = jax.lax.integer_pow(p, int(gamma))              # gamma==2 -> p*p
    else:
        mod = jnp.power(jnp.maximum(p, 1e-12), gamma)
    loss = jnp.where(valid, ce * mod, 0.0)                    # mask padded lanes

    out_ref[...] += jnp.sum(loss, axis=0)                     # fold batch, accumulate


def focal_neg_loss_sum(logits, *, gamma, max_tile=32768):
    """Sum of sigmoid(x)^gamma * softplus(x) over every logit.

    logits: (bs, K, H*W) in its native dtype.
    """
    bs, k, hw = logits.shape
    in_bytes = jnp.dtype(logits.dtype).itemsize

    # VMEM budget (per-generation): 2x double-buffered input block (bs,K,tile)
    # + 2x f32 (K,tile) accumulator buffers must fit in ~1/3 of physical VMEM
    # (~21 MiB on v7x's 64 MiB, ~42 MiB on v5e/v6e's 128 MiB).
    phys = _tpu_vmem_bytes()
    budget = phys // 3
    per_lane = 2 * k * (bs * in_bytes + 4)
    cap = max(128, min(max_tile, budget // per_lane))
    if hw <= cap:
        tile_hw = hw                       # full dim (exempt from 128-multiple)
    else:
        tile_hw = (cap // 128) * 128       # lane-dense 128-multiple tile
    nb = pl.cdiv(hw, tile_hw)

    n_cores = _num_tensorcores()
    n_par = n_cores if nb >= n_cores else 1
    nb_inner = (nb + n_par - 1) // n_par

    def blk_idx(c, j):
        # Clamp so the DMA origin always stays inside the array; the in-kernel
        # lane mask zeroes any duplicated / out-of-range contribution.
        return jnp.minimum(c * nb_inner + j, nb - 1)

    kernel = functools.partial(_focal_neg_kernel, gamma=float(gamma),
                               hw=hw, tile_hw=tile_hw, nb_inner=nb_inner)

    partials = pl.pallas_call(
        kernel,
        out_shape=jax.ShapeDtypeStruct((n_par, k, tile_hw), jnp.float32),
        grid=(n_par, nb_inner),
        in_specs=[
            pl.BlockSpec((bs, k, tile_hw),
                         lambda c, j: (0, 0, blk_idx(c, j))),
        ],
        out_specs=pl.BlockSpec((None, k, tile_hw), lambda c, j: (c, 0, 0)),
        compiler_params=pltpu.CompilerParams(
            dimension_semantics=("parallel", "arbitrary"),
            vmem_limit_bytes=int(phys * 2 // 3)),   # > v5e's 16 MiB default
    )(logits)

    # Tiny final reduce of the lane-dense partial accumulator(s) (XLA).
    return jnp.sum(partials)


def focal_loss_total(logits3, batch_idx, src_idx, target_classes_o, *, alpha, gamma):
    """Full sigmoid-focal-loss sum = (all-negatives kernel) + M-element JAX fix.

    Assumes the matcher output is a matching (distinct (batch, location) pairs),
    as in the original SetCriterion.
    """
    neg_unscaled = focal_neg_loss_sum(logits3, gamma=gamma)

    # Correction for the M matched positives (JAX side, M is tens of scalars).
    x = logits3[batch_idx, target_classes_o, src_idx].astype(jnp.float32)   # (M,)
    p = jax.nn.sigmoid(x)
    ce_pos = jax.nn.softplus(-x)          # BCE with y = 1
    ce_neg = jax.nn.softplus(x)           # BCE with y = 0
    pos = (1.0 - p) ** gamma * ce_pos
    neg = p ** gamma * ce_neg
    if alpha >= 0.0:
        return (1.0 - alpha) * neg_unscaled + jnp.sum(alpha * pos - (1.0 - alpha) * neg)
    return neg_unscaled + jnp.sum(pos - neg)


# --------------------------------------------------------------------------
# Box loss kernel: GIoU + normalized L1, boxes on lanes, scalar sums in-kernel.
# --------------------------------------------------------------------------
def _box_loss_kernel(src_ref, tgt_ref, size_ref, giou_ref, l1_ref, *, m_valid, eps):
    src = src_ref[...].astype(jnp.float32)      # (4, Mp) xyxy, coords on sublanes
    tgt = tgt_ref[...].astype(jnp.float32)
    size = size_ref[...].astype(jnp.float32)
    mp = src.shape[1]

    valid = jax.lax.broadcasted_iota(jnp.int32, (1, mp), 1) < m_valid     # (1, Mp)

    sx1, sy1, sx2, sy2 = src[0:1], src[1:2], src[2:3], src[3:4]
    tx1, ty1, tx2, ty2 = tgt[0:1], tgt[1:2], tgt[2:3], tgt[3:4]

    area_s = (sx2 - sx1) * (sy2 - sy1)
    area_t = (tx2 - tx1) * (ty2 - ty1)

    iw = jnp.maximum(jnp.minimum(sx2, tx2) - jnp.maximum(sx1, tx1), 0.0)
    ih = jnp.maximum(jnp.minimum(sy2, ty2) - jnp.maximum(sy1, ty1), 0.0)
    inter = iw * ih
    union = area_s + area_t - inter
    # eps-clamped denominators: intentionally avoids the reference's inf/nan on
    # degenerate boxes; identical for valid boxes.
    iou = inter * pl.reciprocal(jnp.maximum(union, eps), approx=True)

    ew = jnp.maximum(sx2, tx2) - jnp.minimum(sx1, tx1)
    eh = jnp.maximum(sy2, ty2) - jnp.minimum(sy1, ty1)
    enclose = ew * eh
    giou = iou - (enclose - union) * pl.reciprocal(jnp.maximum(enclose, eps),
                                                   approx=True)
    giou_loss = jnp.where(valid, 1.0 - giou, 0.0)                         # (1, Mp)

    inv_size = pl.reciprocal(size, approx=True)                            # (4, Mp)
    l1 = jnp.where(valid, jnp.abs((src - tgt) * inv_size), 0.0)            # (4, Mp)

    # In-kernel reduction to scalars -> no (1,Mp)/(4,Mp) HBM writeback.
    giou_ref[...] = jnp.sum(giou_loss, axis=1, keepdims=True)              # (1, 1)
    l1_ref[...] = jnp.sum(l1, axis=1, keepdims=True)                       # (4, 1)


def box_loss_sums(src_boxes, target_boxes, image_size, *, eps=1e-7):
    m = int(src_boxes.shape[0])
    m_pad = max(128, ((m + 127) // 128) * 128)

    def to_lane(x, pad_value):
        xt = jnp.transpose(x.astype(jnp.float32))            # (4, M), tiny
        return jnp.pad(xt, ((0, 0), (0, m_pad - m)), constant_values=pad_value)

    src_p = to_lane(src_boxes, 0.0)
    tgt_p = to_lane(target_boxes, 0.0)
    size_p = to_lane(image_size, 1.0)

    kernel = functools.partial(_box_loss_kernel, m_valid=m, eps=float(eps))
    giou, l1 = pl.pallas_call(
        kernel,
        out_shape=(jax.ShapeDtypeStruct((1, 1), jnp.float32),
                   jax.ShapeDtypeStruct((4, 1), jnp.float32)),
        grid=(1,),
        in_specs=[pl.BlockSpec((4, m_pad), lambda i: (0, 0)),
                  pl.BlockSpec((4, m_pad), lambda i: (0, 0)),
                  pl.BlockSpec((4, m_pad), lambda i: (0, 0))],
        out_specs=(pl.BlockSpec((1, 1), lambda i: (0, 0)),
                   pl.BlockSpec((4, 1), lambda i: (0, 0))),
    )(src_p, tgt_p, size_p)
    return giou[0, 0], jnp.sum(l1)


# --------------------------------------------------------------------------
# SetCriterion.forward equivalent (losses = ['labels', 'boxes'], CenterNet head)
# --------------------------------------------------------------------------
def set_criterion_forward(pred_logits, pred_boxes, targets, indices, *,
                          num_classes, alpha, gamma):
    bs, K, H, W = pred_logits.shape
    hw = H * W

    # Free reshapes only — keep NCHW so class/coord axes land on sublanes and
    # the big spatial axis lands on lanes inside the kernels.
    logits3 = pred_logits.reshape(bs, K, hw)       # (bs, K, HW)
    boxes3 = pred_boxes.reshape(bs, 4, hw)         # (bs, 4, HW)

    # num_boxes (single-process: world_size == 1, clamp min=1)
    # TODO(synk): distributed all_reduce of num_boxes has no Pallas equivalent here.
    num_boxes = float(sum(int(t["labels"].shape[0]) for t in targets))
    num_boxes = max(num_boxes, 1.0)

    # _get_src_permutation_idx
    batch_idx = jnp.concatenate(
        [jnp.full_like(src, i) for i, (src, _) in enumerate(indices)])
    src_idx = jnp.concatenate([src for src, _ in indices])
    target_classes_o = jnp.concatenate(
        [t["labels"][j] for t, (_, j) in zip(targets, indices)]).astype(jnp.int32)

    # ---- labels loss (all-negatives kernel + positive correction) ----
    loss_ce = focal_loss_total(logits3, batch_idx, src_idx, target_classes_o,
                               alpha=alpha, gamma=gamma) / num_boxes

    # ---- boxes loss ----
    src_boxes = boxes3[batch_idx, :, src_idx]                              # (M, 4)
    target_boxes = jnp.concatenate(
        [t["boxes_xyxy"][j] for t, (_, j) in zip(targets, indices)], axis=0)
    image_size = jnp.concatenate(
        [t["image_size_xyxy_tgt"] for t in targets], axis=0)

    giou_sum, l1_sum = box_loss_sums(src_boxes, target_boxes, image_size)

    return {
        "loss_ce": loss_ce,
        "loss_giou": giou_sum / num_boxes,
        "loss_bbox": l1_sum / num_boxes,
    }


# --------------------------------------------------------------------------
# Pure-JAX reference (mirrors the PyTorch code) for a sanity check.
# --------------------------------------------------------------------------
def _reference_losses(pred_logits, pred_boxes, targets, indices, *,
                      num_classes, alpha, gamma):
    bs, K, H, W = pred_logits.shape
    hw = H * W
    batch_idx = jnp.concatenate(
        [jnp.full_like(src, i) for i, (src, _) in enumerate(indices)])
    src_idx = jnp.concatenate([src for src, _ in indices])
    tco = jnp.concatenate(
        [t["labels"][j] for t, (_, j) in zip(targets, indices)]).astype(jnp.int32)
    num_boxes = max(float(sum(int(t["labels"].shape[0]) for t in targets)), 1.0)

    logits = pred_logits.reshape(bs, K, hw).transpose(0, 2, 1)             # (bs, HW, K)
    target_classes = jnp.full((bs, hw), num_classes, jnp.int32)
    target_classes = target_classes.at[batch_idx, src_idx].set(tco)
    labels = (target_classes[..., None] == jnp.arange(K)).astype(jnp.float32)
    x = logits.astype(jnp.float32)
    p = jax.nn.sigmoid(x)
    ce = jnp.maximum(x, 0.0) - x * labels + jnp.log1p(jnp.exp(-jnp.abs(x)))
    p_t = p * labels + (1 - p) * (1 - labels)
    loss = ce * (1 - p_t) ** gamma
    if alpha >= 0:
        loss = (alpha * labels + (1 - alpha) * (1 - labels)) * loss
    loss_ce = jnp.sum(loss) / num_boxes

    boxes = pred_boxes.reshape(bs, 4, hw)
    src_b = boxes[batch_idx, :, src_idx].astype(jnp.float32)               # (M, 4)
    tgt_b = jnp.concatenate(
        [t["boxes_xyxy"][j] for t, (_, j) in zip(targets, indices)], 0)
    size = jnp.concatenate([t["image_size_xyxy_tgt"] for t in targets], 0)

    area_s = (src_b[:, 2] - src_b[:, 0]) * (src_b[:, 3] - src_b[:, 1])
    area_t = (tgt_b[:, 2] - tgt_b[:, 0]) * (tgt_b[:, 3] - tgt_b[:, 1])
    lt = jnp.maximum(src_b[:, :2], tgt_b[:, :2])
    rb = jnp.minimum(src_b[:, 2:], tgt_b[:, 2:])
    wh = jnp.clip(rb - lt, 0)
    inter = wh[:, 0] * wh[:, 1]
    union = area_s + area_t - inter
    iou = inter / union
    lt_e = jnp.minimum(src_b[:, :2], tgt_b[:, :2])
    rb_e = jnp.maximum(src_b[:, 2:], tgt_b[:, 2:])
    wh_e = jnp.clip(rb_e - lt_e, 0)
    enclose = wh_e[:, 0] * wh_e[:, 1]
    giou = iou - (enclose - union) / enclose
    loss_giou = jnp.sum(1.0 - giou) / num_boxes
    loss_bbox = jnp.sum(jnp.abs(src_b / size - tgt_b / size)) / num_boxes
    return {"loss_ce": loss_ce, "loss_giou": loss_giou, "loss_bbox": loss_bbox}


if __name__ == "__main__":
    key = jax.random.PRNGKey(0)
    bs, num_classes, H, W = 2, 8, 16, 16
    alpha, gamma = 0.25, 2.0  # cfg.MODEL.OneNet.{ALPHA,GAMMA}
    k1, k2, k3, k4 = jax.random.split(key, 4)

    # pred_logits: NCHW [bs, num_classes, H, W]
    pred_logits = jax.random.normal(k1, (bs, num_classes, H, W), jnp.float32)

    # pred_boxes: NCHW [bs, 4, H, W], valid xyxy (x2 >= x1, y2 >= y1)
    xy1 = jax.random.uniform(k2, (bs, 2, H, W), jnp.float32) * 100.0
    wh = jax.random.uniform(k3, (bs, 2, H, W), jnp.float32) * 200.0 + 1.0
    pred_boxes = jnp.concatenate([xy1, xy1 + wh], axis=1)

    # synthetic targets (len == batch size)
    img_sizes = [(640.0, 480.0), (512.0, 512.0)]
    num_gt = [3, 4]
    targets = []
    gkey = k4
    for b in range(bs):
        gkey, ka, kb, kc = jax.random.split(gkey, 4)
        n = num_gt[b]
        w_img, h_img = img_sizes[b]
        labels = jax.random.randint(ka, (n,), 0, num_classes)
        cxy = (jax.random.uniform(kb, (n, 2)) * jnp.array([w_img * 0.6, h_img * 0.6])
               + jnp.array([w_img * 0.2, h_img * 0.2]))
        bwh = jax.random.uniform(kc, (n, 2)) * jnp.array([w_img * 0.2, h_img * 0.2]) + 4.0
        boxes_xyxy = jnp.concatenate([cxy - bwh / 2, cxy + bwh / 2], axis=1)
        image_size_xyxy_tgt = jnp.tile(
            jnp.array([w_img, h_img, w_img, h_img], jnp.float32), (n, 1))
        targets.append(dict(labels=labels, boxes_xyxy=boxes_xyxy,
                            image_size_xyxy_tgt=image_size_xyxy_tgt))

    # TODO(synk): the Hungarian / MinCost matcher has no clean Pallas equivalent;
    # use a deterministic synthetic assignment (distinct prediction locations per GT).
    indices = [
        (jnp.array([10, 100, 200], jnp.int32), jnp.array([0, 1, 2], jnp.int32)),
        (jnp.array([5, 55, 150, 250], jnp.int32), jnp.array([0, 1, 2, 3], jnp.int32)),
    ]

    losses = set_criterion_forward(pred_logits, pred_boxes, targets, indices,
                                   num_classes=num_classes, alpha=alpha, gamma=gamma)
    jax.block_until_ready(losses)

    # Sanity check vs. the pure-JAX reference (loose tolerance: approx recip).
    ref = _reference_losses(pred_logits, pred_boxes, targets, indices,
                            num_classes=num_classes, alpha=alpha, gamma=gamma)
    for name in ("loss_ce", "loss_giou", "loss_bbox"):
        got, want = losses[name], ref[name]
        if not bool(jnp.allclose(got, want, rtol=1e-2, atol=1e-3)):
            raise AssertionError(f"{name}: kernel={float(got)} ref={float(want)}")

    print("KERNEL_OK")
</pallas_src>

<mosaic_0001>
module attributes {stable_mosaic.version = 11 : i64} {
  func.func @_focal_neg_kernel(%arg0: i32, %arg1: i32, %arg2: memref<2x8x256xf32, #tpu.memory_space<vmem>>, %arg3: memref<1x8x256xf32, #tpu.memory_space<vmem>>) attributes {dimension_semantics = [#tpu.dimension_semantics<parallel>, #tpu.dimension_semantics<arbitrary>], iteration_bounds = array<i64: 1, 1>, scalar_prefetch = 0 : i64, scratch_operands = 0 : i64, tpu.core_type = #tpu.core_type<tc>, window_params = [{transform_indices = @transform_0, window_bounds = array<i64: 2, 8, 256>}, {transform_indices = @transform_1, window_bounds = array<i64: 1, 8, 256>}]} {
    %c0_i32 = arith.constant 0 : i32
    %0 = arith.cmpi eq, %arg1, %c0_i32 : i32
    %1 = arith.extui %0 : i1 to i32
    %c0_i32_0 = arith.constant 0 : i32
    %2 = arith.cmpi ne, %1, %c0_i32_0 : i32
    scf.if %2 {
      %cst_15 = arith.constant 0.000000e+00 : f32
      %40 = vector.broadcast %cst_15 : f32 to vector<8x256xf32>
      %c0_16 = arith.constant 0 : index
      %c0_17 = arith.constant 0 : index
      %c0_18 = arith.constant 0 : index
      %41 = vector.load %arg3[%c0_16, %c0_17, %c0_18] : memref<1x8x256xf32, #tpu.memory_space<vmem>>, vector<1x8x256xf32>
      %42 = vector.shape_cast %41 : vector<1x8x256xf32> to vector<8x256xf32>
      %43 = vector.shape_cast %40 : vector<8x256xf32> to vector<1x8x256xf32>
      tpu.vector_store %arg3[%c0_16, %c0_17, %c0_18], %43 {strides = array<i32>} : memref<1x8x256xf32, #tpu.memory_space<vmem>>, vector<1x8x256xf32>,
    } else {
    }
    %c0 = arith.constant 0 : index
    %c0_1 = arith.constant 0 : index
    %c0_2 = arith.constant 0 : index
    %3 = vector.load %arg2[%c0, %c0_1, %c0_2] : memref<2x8x256xf32, #tpu.memory_space<vmem>>, vector<2x8x256xf32>
    %c1_i32 = arith.constant 1 : i32
    %4 = arith.muli %arg0, %c1_i32 : i32
    %5 = arith.addi %4, %arg1 : i32
    %6 = tpu.iota {dimensions = array<i32: 2>} : vector<1x1x256xi32>
    %c256_i32 = arith.constant 256 : i32
    %7 = arith.muli %5, %c256_i32 : i32
    %8 = vector.broadcast %7 : i32 to vector<1x1x256xi32>
    %9 = arith.addi %8, %6 : vector<1x1x256xi32>
    %c256_i32_3 = arith.constant 256 : i32
    %10 = vector.broadcast %c256_i32_3 : i32 to vector<1x1x256xi32>
    %11 = arith.cmpi slt, %9, %10 : vector<1x1x256xi32>
    %12 = math.absf %3 : vector<2x8x256xf32>
    %cst = arith.constant 0.000000e+00 : f32
    %13 = vector.broadcast %cst : f32 to vector<2x8x256xf32>
    %14 = arith.subf %13, %12 : vector<2x8x256xf32>
    %15 = math.exp %14 : vector<2x8x256xf32>
    %cst_4 = arith.constant 0.000000e+00 : f32
    %16 = vector.broadcast %cst_4 : f32 to vector<2x8x256xf32>
    %17 = arith.maximumf %3, %16 : vector<2x8x256xf32>
    %18 = math.log1p %15 : vector<2x8x256xf32>
    %19 = arith.addf %17, %18 : vector<2x8x256xf32>
    %cst_5 = arith.constant 1.000000e+00 : f32
    %20 = vector.broadcast %cst_5 : f32 to vector<2x8x256xf32>
    %21 = arith.addf %20, %15 : vector<2x8x256xf32>
    %22 = tpu.reciprocal %21 {approx = true} : vector<2x8x256xf32> -> vector<2x8x256xf32>
    %cst_6 = arith.constant 0.000000e+00 : f32
    %23 = vector.broadcast %cst_6 : f32 to vector<2x8x256xf32>
    %24 = arith.cmpf oge, %3, %23 : vector<2x8x256xf32>
    %25 = arith.mulf %15, %22 : vector<2x8x256xf32>
    %26 = arith.select %24, %22, %25 : vector<2x8x256xi1>, vector<2x8x256xf32>
    %27 = arith.mulf %26, %26 : vector<2x8x256xf32>
    %28 = arith.mulf %19, %27 : vector<2x8x256xf32>
    %cst_7 = arith.constant 0.000000e+00 : f32
    %29 = vector.shape_cast %11 : vector<1x1x256xi1> to vector<1x1x256xi1>
    %30 = vector.broadcast %29 : vector<1x1x256xi1> to vector<2x8x256xi1>
    %31 = vector.broadcast %cst_7 : f32 to vector<2x8x256xf32>
    %32 = arith.select %30, %28, %31 : vector<2x8x256xi1>, vector<2x8x256xf32>
    %c0_8 = arith.constant 0 : index
    %c0_9 = arith.constant 0 : index
    %c0_10 = arith.constant 0 : index
    %33 = vector.load %arg3[%c0_8, %c0_9, %c0_10] : memref<1x8x256xf32, #tpu.memory_space<vmem>>, vector<1x8x256xf32>
    %34 = vector.shape_cast %33 : vector<1x8x256xf32> to vector<8x256xf32>
    %cst_11 = arith.constant dense<0.000000e+00> : vector<8x256xf32>
    %35 = vector.multi_reduction <add>, %32, %cst_11 [0] : vector<2x8x256xf32> to vector<8x256xf32>
    %36 = arith.addf %34, %35 : vector<8x256xf32>
    %c0_12 = arith.constant 0 : index
    %c0_13 = arith.constant 0 : index
    %c0_14 = arith.constant 0 : index
    %37 = vector.load %arg3[%c0_12, %c0_13, %c0_14] : memref<1x8x256xf32, #tpu.memory_space<vmem>>, vector<1x8x256xf32>
    %38 = vector.shape_cast %37 : vector<1x8x256xf32> to vector<8x256xf32>
    %39 = vector.shape_cast %36 : vector<8x256xf32> to vector<1x8x256xf32>
    tpu.vector_store %arg3[%c0_12, %c0_13, %c0_14], %39 {strides = array<i32>} : memref<1x8x256xf32, #tpu.memory_space<vmem>>, vector<1x8x256xf32>,
    return
  }
  func.func @transform_0(%arg0: i32, %arg1: i32) -> (i32, i32, i32) {
    %c1_i32 = arith.constant 1 : i32
    %0 = arith.muli %arg0, %c1_i32 : i32
    %1 = arith.addi %0, %arg1 : i32
    %c0_i32 = arith.constant 0 : i32
    %2 = arith.minsi %1, %c0_i32 : i32
    %c0_i32_0 = arith.constant 0 : i32
    %c0_i32_1 = arith.constant 0 : i32
    %c0_i32_2 = arith.constant 0 : i32
    return %c0_i32_0, %c0_i32_1, %2 : i32, i32, i32
  }
  func.func @transform_1(%arg0: i32, %arg1: i32) -> (i32, i32, i32) {
    %c0_i32 = arith.constant 0 : i32
    %c0_i32_0 = arith.constant 0 : i32
    %c0_i32_1 = arith.constant 0 : i32
    return %arg0, %c0_i32, %c0_i32_0 : i32, i32, i32
  }
}

</mosaic_0001>

<llo_original>
// kernel: tpu_custom_call.1
$region0: #{tpu_custom_call.1}
  #allocation0 [shape = 'u32[]', space=smem, size = 0x4, offset = 0x4, fixed_abs, tag = 'smem constant byte address 0x4 - core index']
  #allocation1 [shape = 'u32[72,128]{1,0:T(1,128)}', space=vmem, size = 0x9000, scoped, tag = 'internal scratch']
  %s0 = inlined_call_operand.hbm [shape: f32[2,8,256], index: 0, kind: input, shape index: {}]
  %s1 = inlined_call_operand.hbm [shape: f32[1,8,256], index: 1, kind: output, shape index: {}]
  %s2 = sld [smem:[#allocation0]]
  $region22: #{tpu_custom_call.1} parent=0
    _
  %s4 = ssub.s32 1, %s2
  %s5 = scalar_select 0, %s4, %s2
  $region1: #{tpu_custom_call.1} parent=0
    #allocation2 [shape = 'u8[16384]{0}', space=vmem, size = 0x4000, scoped, tag = 'input window, operand 0, single buffered']
    #allocation3 [shape = 's32[1]{0}', space=sflag, size = 0x4, scoped, tag = 'scoped memory for tpu_custom_call.1']
    #allocation4 [shape = 's32[1]{0}', space=sflag, size = 0x4, scoped, tag = 'scoped memory for tpu_custom_call.1']
    #allocation5 [shape = 'u8[8192]{0}', space=vmem, size = 0x2000, scoped, tag = 'output window, operand 0, single buffered']
    %6 = vsyncpa [#allocation3], 0
    %7 = vsyncpa [#allocation4], 0
    // Predicated region
    $region2: #{tpu_custom_call.1} parent=1 // pred_check
      _
    $region3: #{tpu_custom_call.1} parent=1 // pred_check_branch
      %9 = sbr.rel (0) target = $region5
    $region4: #{tpu_custom_call.1} parent=1 // pred_region
      %s10 = sadd.s32 0, 0
      %p11 = scmp.lt.s32.totalorder %s10, 0
      %s12 = scalar_select %p11, %s10, 0
      %s13 = smul.u32 2, %s12
      %15 = vsyncadd [#allocation3], 0
      %s16 = smul.addr %s13, 8
      %s17 = scalar_lea.hbm %s0, %s16
      %s18 = sshll.u32 %s17, 4
      %s19 = int_to_ptr.hbm [resolvable:$true] %s18
      %s20 = sshll.u32 [#allocation2], 4
      %s21 = int_to_ptr.vmem [resolvable:$true] %s20
      %26 = dma.hbm_to_vmem [thread:$0]  %s19, 512, %s21, [#allocation3], 256, 256, 16
    $region5: #{tpu_custom_call.1} parent=1 // pred_fallthru
      _
    // Predicated region
    $region6: #{tpu_custom_call.1} parent=1 // pred_check
      _
    $region7: #{tpu_custom_call.1} parent=1 // pred_check_branch
      %28 = sbr.rel (0) target = $region9
    $region8: #{tpu_custom_call.1} parent=1 // pred_region
      %30 = dma.done [#allocation3], 512
    $region9: #{tpu_custom_call.1} parent=1 // pred_fallthru
      _
    %s31 = sadd.s32 0, 0
    %p32 = scmp.lt.s32.totalorder %s31, 0
    %s33 = scalar_select %p32, %s31, 0
    %s34 = smul.u32 2, %s33
    %p35 = scmp.eq.s32.totalorder 0, 0
    // Predicated region
    $region10: #{tpu_custom_call.1} parent=1 // pred_check
      %p36 = pneg %p35
    $region11: #{tpu_custom_call.1} parent=1 // pred_check_branch
      %38 = sbr.rel (%p36) target = $region13
    $region12: #{tpu_custom_call.1} parent=1 // pred_region
      %39 = vst [vmem:[#allocation5] sm:$0xff] 0.0
      %40 = vst [vmem:[#allocation5 + $0x8] sm:$0xff] 0.0
    $region13: #{tpu_custom_call.1} parent=1 // pred_fallthru
      _
    %v41 = vld [vmem:[#allocation2] sm:$0xff]
    %v42 = vld [vmem:[#allocation2 + $0x8] sm:$0xff]
    %v43 = vld [vmem:[#allocation2 + $0x10] sm:$0xff]
    %v44 = vld [vmem:[#allocation2 + $0x18] sm:$0xff]
    %s45 = sadd.s32 0, 0
    %v46 = vlaneseq
    %v47 = vand.u32 %v46, 127
    %v48 = vadd.s32 %v47, 128
    %s49 = smul.u32 %s45, 256
    %v50 = vstv %s49
    %v51 = vadd.s32 %v50, %v47
    %v52 = vadd.s32 %v50, %v48
    %vm53 = vcmp.lt.s32.totalorder %v51, 256
    %vm54 = vcmp.lt.s32.totalorder %v52, 256
    %v55 = vand.u32 2147483647, %v41
    %v56 = vand.u32 2147483647, %v42
    %v57 = vand.u32 2147483647, %v43
    %v58 = vand.u32 2147483647, %v44
    %v59 = vsub.f32 0.0, %v55
    %v60 = vsub.f32 0.0, %v56
    %v61 = vsub.f32 0.0, %v57
    %v62 = vsub.f32 0.0, %v58
    %v63 = vmul.f32 %v59, 1.442695
    %v64 = vpow.pop %v63
    %v65 = vmul.f32 %v60, 1.442695
    %v66 = vpow.pop %v65
    %v67 = vmul.f32 %v61, 1.442695
    %v68 = vpow.pop %v67
    %v69 = vmul.f32 %v62, 1.442695
    %v70 = vpow.pop %v69
    %v71 = vmax.f32 %v41, 0.0
    %v72 = vmax.f32 %v42, 0.0
    %v73 = vmax.f32 %v43, 0.0
    %v74 = vmax.f32 %v44, 0.0
    %v75 = vadd.f32 %v64, 1.0
    %v76 = vlog2.pop %v75
    %v77 = vmul.f32 %v76, 0.6931472
    %v78 = vmul.f32 -0.5, %v64
    %v79 = vadd.f32 %v78, 1.0
    %v80 = vmul.f32 %v79, %v64
    %v81 = vand.u32 2147483647, %v64
    %vm82 = vcmp.lt.f32.partialorder %v81, 0.0004427343
    %v83 = vsel %vm82, %v80, %v77
    %v84 = vadd.f32 %v66, 1.0
    %v85 = vlog2.pop %v84
    %v86 = vmul.f32 %v85, 0.6931472
    %v87 = vmul.f32 -0.5, %v66
    %v88 = vadd.f32 %v87, 1.0
    %v89 = vmul.f32 %v88, %v66
    %v90 = vand.u32 2147483647, %v66
    %vm91 = vcmp.lt.f32.partialorder %v90, 0.0004427343
    %v92 = vsel %vm91, %v89, %v86
    %v93 = vadd.f32 %v68, 1.0
    %v94 = vlog2.pop %v93
    %v95 = vmul.f32 %v94, 0.6931472
    %v96 = vmul.f32 -0.5, %v68
    %v97 = vadd.f32 %v96, 1.0
    %v98 = vmul.f32 %v97, %v68
    %v99 = vand.u32 2147483647, %v68
    %vm100 = vcmp.lt.f32.partialorder %v99, 0.0004427343
    %v101 = vsel %vm100, %v98, %v95
    %v102 = vadd.f32 %v70, 1.0
    %v103 = vlog2.pop %v102
    %v104 = vmul.f32 %v103, 0.6931472
    %v105 = vmul.f32 -0.5, %v70
    %v106 = vadd.f32 %v105, 1.0
    %v107 = vmul.f32 %v106, %v70
    %v108 = vand.u32 2147483647, %v70
    %vm109 = vcmp.lt.f32.partialorder %v108, 0.0004427343
    %v110 = vsel %vm109, %v107, %v104
    %v111 = vadd.f32 %v71, %v83
    %v112 = vadd.f32 %v72, %v92
    %v113 = vadd.f32 %v73, %v101
    %v114 = vadd.f32 %v74, %v110
    %v115 = vadd.f32 %v64, 1.0
    %v116 = vadd.f32 %v66, 1.0
    %v117 = vadd.f32 %v68, 1.0
    %v118 = vadd.f32 %v70, 1.0
    %v119 = vrcp.pop %v115
    %v120 = vrcp.pop %v116
    %v121 = vrcp.pop %v117
    %v122 = vrcp.pop %v118
    %vm123 = vcmp.ge.f32.partialorder %v41, 0.0
    %vm124 = vcmp.ge.f32.partialorder %v42, 0.0
    %vm125 = vcmp.ge.f32.partialorder %v43, 0.0
    %vm126 = vcmp.ge.f32.partialorder %v44, 0.0
    %v127 = vmul.f32 %v64, %v119
    %v128 = vmul.f32 %v66, %v120
    %v129 = vmul.f32 %v68, %v121
    %v130 = vmul.f32 %v70, %v122
    %v131 = vsel %vm123, %v119, %v127
    %v132 = vsel %vm124, %v120, %v128
    %v133 = vsel %vm125, %v121, %v129
    %v134 = vsel %vm126, %v122, %v130
    %v135 = vmul.f32 %v131, %v131
    %v136 = vmul.f32 %v132, %v132
    %v137 = vmul.f32 %v133, %v133
    %v138 = vmul.f32 %v134, %v134
    %v139 = vmul.f32 %v111, %v135
    %v140 = vmul.f32 %v112, %v136
    %v141 = vmul.f32 %v113, %v137
    %v142 = vmul.f32 %v114, %v138
    %v143 = vsel %vm53, 1, 0
    %v144 = vsel %vm54, 1, 0
    %vm145 = vcmp.eq.s32.totalorder %v143, 1
    %vm146 = vcmp.eq.s32.totalorder %v144, 1
    %v147 = vsel %vm145, %v139, 0.0
    %v148 = vsel %vm146, %v140, 0.0
    %v149 = vsel %vm145, %v141, 0.0
    %v150 = vsel %vm146, %v142, 0.0
    %v151 = vld [vmem:[#allocation5] sm:$0xff]
    %v152 = vld [vmem:[#allocation5 + $0x8] sm:$0xff]
    %v153 = vadd.f32 %v147, %v149
    %v154 = vadd.f32 %v148, %v150
    %v155 = vadd.f32 %v151, %v153
    %v156 = vadd.f32 %v152, %v154
    %157 = vst [vmem:[#allocation5] sm:$0xff] %v155
    %158 = vst [vmem:[#allocation5 + $0x8] sm:$0xff] %v156
    // Predicated region
    $region14: #{tpu_custom_call.1} parent=1 // pred_check
      _
    $region15: #{tpu_custom_call.1} parent=1 // pred_check_branch
      %160 = sbr.rel (0) target = $region17
    $region16: #{tpu_custom_call.1} parent=1 // pred_region
      %162 = vsyncadd [#allocation4], 0
      %s164 = sshll.u32 [#allocation5], 4
      %s165 = int_to_ptr.vmem [resolvable:$true] %s164
      %s166 = sshll.u32 %s1, 4
      %s167 = int_to_ptr.hbm [resolvable:$true] %s166
      %169 = dma.vmem_to_hbm [thread:$0]  %s165, 256, %s167, [#allocation4]
    $region17: #{tpu_custom_call.1} parent=1 // pred_fallthru
      _
    // Predicated region
    $region18: #{tpu_custom_call.1} parent=1 // pred_check
      _
    $region19: #{tpu_custom_call.1} parent=1 // pred_check_branch
      %171 = sbr.rel (0) target = $region21
    $region20: #{tpu_custom_call.1} parent=1 // pred_region
      %173 = dma.done [#allocation4], 256
    $region21: #{tpu_custom_call.1} parent=1 // pred_fallthru
      _
    %174 = vsyncpa [#allocation3], 1
    %175 = vsyncpa [#allocation4], 1

</llo_original>
